<compile_context>
chip_gen: v6e
topology: v6e:2x2x1
jax: 0.10.0
libtpu: 0.0.40
codegen_flags: <defaults>
</compile_context>

<pallas_src>
import jax
import jax.numpy as jnp
from jax.experimental import pallas as pl
from jax.experimental.pallas import tpu as pltpu


def _zero_kernel(x_ref, o_ref):
    # out = x * 0  (keeps dtype and the NaN/Inf-propagation semantics of x.mul(0.0))
    o_ref[...] = x_ref[...] * jnp.array(0, dtype=o_ref.dtype)


def zero_forward(x, stride):
    """Pallas equivalent of Zero(stride).forward(x). x is NCHW."""
    N, C, H, W = x.shape

    # Spatial subsample wrapper-side: the Pallas kernel only touches the bytes
    # it actually outputs (cuts HBM reads by stride^2 for stride > 1).
    if stride != 1:
        x = x[:, :, ::stride, ::stride]
    _, _, H_out, W_out = x.shape

    total = N * C * H_out * W_out
    dtype = x.dtype
    itemsize = jnp.dtype(dtype).itemsize

    # Lane-dense 2D slab: lane width multiple of 128 -> unmasked full stores;
    # large row-blocks -> short grid (not per-step-overhead-bound).
    LANE = 1024 if total >= 8 * 1024 else 128
    n_rows = pl.cdiv(total, LANE)
    BR = min(512, ((n_rows + 7) // 8) * 8)   # block rows, multiple of 8
    grid = pl.cdiv(n_rows, BR)
    padded_rows = grid * BR
    padded_total = padded_rows * LANE

    flat = x.reshape(-1)
    if padded_total != total:
        flat = jnp.pad(flat, (0, padded_total - total))
    slab = flat.reshape(padded_rows, LANE)

    out_slab = pl.pallas_call(
        _zero_kernel,
        out_shape=jax.ShapeDtypeStruct((padded_rows, LANE), dtype),
        grid_spec=pltpu.PrefetchScalarGridSpec(
            num_scalar_prefetch=0,
            grid=(grid,),
            in_specs=[pl.BlockSpec((BR, LANE), lambda i: (i, 0))],
            out_specs=pl.BlockSpec((BR, LANE), lambda i: (i, 0)),
        ),
        compiler_params=pltpu.CompilerParams(
            dimension_semantics=("parallel",),
        ),
        cost_estimate=pl.CostEstimate(
            flops=padded_total,
            transcendentals=0,
            bytes_accessed=2 * padded_total * itemsize,
        ),
    )(slab)

    return out_slab.reshape(-1)[:total].reshape(N, C, H_out, W_out)


if __name__ == "__main__":
    key = jax.random.PRNGKey(0)
    x = jax.random.normal(key, (2, 4, 16, 16), dtype=jnp.float32)

    # stride == 1 path
    y1 = zero_forward(x, stride=1)
    jax.block_until_ready(y1)
    assert y1.shape == (2, 4, 16, 16)
    assert bool(jnp.all(y1 == 0.0))

    # stride == 2 path
    y2 = zero_forward(x, stride=2)
    jax.block_until_ready(y2)
    assert y2.shape == (2, 4, 8, 8)
    assert bool(jnp.all(y2 == 0.0))

    # reference check against pure-JAX semantics of the PyTorch module
    ref1 = x * 0.0
    ref2 = x[:, :, ::2, ::2] * 0.0
    assert jnp.allclose(y1, ref1)
    assert jnp.allclose(y2, ref2)

    print("KERNEL_OK")
</pallas_src>

<mosaic_0001>
module attributes {stable_mosaic.version = 11 : i64} {
  func.func @_zero_kernel(%arg0: i32, %arg1: memref<16x128xf32, #tpu.memory_space<vmem>>, %arg2: memref<16x128xf32, #tpu.memory_space<vmem>>) attributes {dimension_semantics = [#tpu.dimension_semantics<parallel>], iteration_bounds = array<i64: 1>, scalar_prefetch = 0 : i64, scratch_operands = 0 : i64, tpu.core_type = #tpu.core_type<tc>, window_params = [{transform_indices = @transform_0, window_bounds = array<i64: 16, 128>}, {transform_indices = @transform_1, window_bounds = array<i64: 16, 128>}]} {
    %c0 = arith.constant 0 : index
    %c0_0 = arith.constant 0 : index
    %0 = vector.load %arg1[%c0, %c0_0] : memref<16x128xf32, #tpu.memory_space<vmem>>, vector<16x128xf32>
    %cst = arith.constant 0.000000e+00 : f32
    %1 = vector.broadcast %cst : f32 to vector<16x128xf32>
    %2 = arith.mulf %0, %1 : vector<16x128xf32>
    %c0_1 = arith.constant 0 : index
    %c0_2 = arith.constant 0 : index
    %3 = vector.load %arg2[%c0_1, %c0_2] : memref<16x128xf32, #tpu.memory_space<vmem>>, vector<16x128xf32>
    tpu.vector_store %arg2[%c0_1, %c0_2], %2 {strides = array<i32>} : memref<16x128xf32, #tpu.memory_space<vmem>>, vector<16x128xf32>,
    return
  }
  func.func @transform_0(%arg0: i32) -> (i32, i32) {
    %c0_i32 = arith.constant 0 : i32
    %c0_i32_0 = arith.constant 0 : i32
    return %arg0, %c0_i32 : i32, i32
  }
  func.func @transform_1(%arg0: i32) -> (i32, i32) {
    %c0_i32 = arith.constant 0 : i32
    %c0_i32_0 = arith.constant 0 : i32
    return %arg0, %c0_i32 : i32, i32
  }
}

</mosaic_0001>

<llo_original>
// kernel: tpu_custom_call.1
$region0: #{tpu_custom_call.1}
  #allocation0 [shape = 'u32[]', space=smem, size = 0x4, offset = 0x4, fixed_abs, tag = 'smem constant byte address 0x4 - core index']
  #allocation1 [shape = 'u32[144,128]{1,0:T(1,128)}', space=vmem, size = 0x12000, scoped, tag = 'internal scratch']
  %s0 = inlined_call_operand.hbm [shape: f32[16,128], index: 0, kind: input, shape index: {}]
  %s1 = inlined_call_operand.hbm [shape: f32[16,128], index: 1, kind: output, shape index: {}]
  %s2 = sld [smem:[#allocation0]]
  $region18: #{tpu_custom_call.1} parent=0
    _
  %s4 = ssub.s32 1, %s2
  %s5 = scalar_select 0, %s4, %s2
  $region1: #{tpu_custom_call.1} parent=0
    #allocation2 [shape = 'u8[8192]{0}', space=vmem, size = 0x2000, scoped, tag = 'input window, operand 0, single buffered']
    #allocation3 [shape = 's32[1]{0}', space=sflag, size = 0x4, scoped, tag = 'scoped memory for tpu_custom_call.1']
    #allocation4 [shape = 's32[1]{0}', space=sflag, size = 0x4, scoped, tag = 'scoped memory for tpu_custom_call.1']
    #allocation5 [shape = 'u8[8192]{0}', space=vmem, size = 0x2000, scoped, tag = 'output window, operand 0, single buffered']
    %6 = vsyncpa [#allocation3], 0
    %7 = vsyncpa [#allocation4], 0
    // Predicated region
    $region2: #{tpu_custom_call.1} parent=1 // pred_check
      _
    $region3: #{tpu_custom_call.1} parent=1 // pred_check_branch
      %9 = sbr.rel (0) target = $region5
    $region4: #{tpu_custom_call.1} parent=1 // pred_region
      %s11 = ssub.s32 256, 256
      %12 = vsyncadd [#allocation3], %s11
      %s13 = sshll.u32 [#allocation2], 4
      %s14 = int_to_ptr.vmem [resolvable:$true] %s13
      %19 = dma.hbm_to_vmem [thread:$0]  %s0, 256, %s14, [#allocation3], 128, 128, 8
    $region5: #{tpu_custom_call.1} parent=1 // pred_fallthru
      _
    // Predicated region
    $region6: #{tpu_custom_call.1} parent=1 // pred_check
      _
    $region7: #{tpu_custom_call.1} parent=1 // pred_check_branch
      %21 = sbr.rel (0) target = $region9
    $region8: #{tpu_custom_call.1} parent=1 // pred_region
      %22 = dma.done [#allocation3], 256
    $region9: #{tpu_custom_call.1} parent=1 // pred_fallthru
      _
    %v23 = vld [vmem:[#allocation2] sm:$0xff]
    %v24 = vld [vmem:[#allocation2 + $0x8] sm:$0xff]
    %v25 = vmul.f32 %v23, 0.0
    %v26 = vmul.f32 %v24, 0.0
    %27 = vst [vmem:[#allocation5] sm:$0xff] %v25
    %28 = vst [vmem:[#allocation5 + $0x8] sm:$0xff] %v26
    // Predicated region
    $region10: #{tpu_custom_call.1} parent=1 // pred_check
      _
    $region11: #{tpu_custom_call.1} parent=1 // pred_check_branch
      %30 = sbr.rel (0) target = $region13
    $region12: #{tpu_custom_call.1} parent=1 // pred_region
      %s32 = ssub.s32 256, 256
      %33 = vsyncadd [#allocation4], %s32
      %s34 = sshll.u32 [#allocation5], 4
      %s35 = int_to_ptr.vmem [resolvable:$true] %s34
      %40 = dma.vmem_to_hbm [thread:$0]  %s35, 256, %s1, [#allocation4], 128, 128, 8
    $region13: #{tpu_custom_call.1} parent=1 // pred_fallthru
      _
    // Predicated region
    $region14: #{tpu_custom_call.1} parent=1 // pred_check
      _
    $region15: #{tpu_custom_call.1} parent=1 // pred_check_branch
      %42 = sbr.rel (0) target = $region17
    $region16: #{tpu_custom_call.1} parent=1 // pred_region
      %43 = dma.done [#allocation4], 256
    $region17: #{tpu_custom_call.1} parent=1 // pred_fallthru
      _
    %44 = vsyncpa [#allocation3], 1
    %45 = vsyncpa [#allocation4], 1

</llo_original>
